<compile_context>
chip_gen: v7x
topology: tpu7x:2x2x1
jax: 0.10.0
libtpu: 0.0.40
codegen_flags: <defaults>
</compile_context>

<pallas_src>
import functools

import jax
import jax.numpy as jnp
from jax.experimental import pallas as pl
from jax.experimental.pallas import tpu as pltpu

PAI = 3.141592653589793
MU0 = 4.0 * PAI * 1e-07
C = 299792458.0
EPSILON0 = 1.0 / (C ** 2 * MU0)

_LANES = 128
_SUBLANES = 8
_MAX_TILE_ROWS = 1024   # 1024x128 f32 = 512 KiB/plane; 5 planes x 2 bufs = 5 MiB VMEM
_MIN_TILES = 4          # >= 2 tiles per TC on v7x + room for DMA/compute overlap


def _green_kernel(in_ref, out_ref, *, k, omega):
    # in_ref tile: (3, tile_rows, 128) = (dx, dy, dz); out_ref tile: (2, tile_rows, 128).
    dx = in_ref[0]
    dy = in_ref[1]
    dz = in_ref[2]

    dz2 = dz * dz
    r2 = dx * dx + dy * dy + dz2
    inv_r = jax.lax.rsqrt(r2)          # single EUP rsqrt; r, 1/r, 1/r^2 derived from it
    r = r2 * inv_r
    inv_r2 = inv_r * inv_r

    # Constants folded at trace time (plain Python floats -> VPU multiplies).
    inv_k = 1.0 / k
    inv_k2 = inv_k * inv_k
    scale_c = (omega * MU0) / (4.0 * PAI)   # = (-coeff_imag) * 1/(4*pi)

    phase = -k * r
    s = (scale_c * inv_r2) * inv_r          # single per-element scale = |coeff|/(4*pi*r^3)
    cr = jnp.cos(phase) * s
    si = jnp.sin(phase) * s

    h1_real = r2 - inv_k2
    h1_imag = -inv_k * r
    h2_real = (3.0 * inv_k2) * inv_r2 - 1.0
    h2_imag = (3.0 * inv_k) * inv_r

    Gzz_real = h1_real + dz2 * h2_real
    Gzz_imag = h1_imag + dz2 * h2_imag

    # coeff_imag signs are folded statically into the two expressions below.
    out_ref[0] = cr * Gzz_imag + si * Gzz_real   # G_real
    out_ref[1] = si * Gzz_imag - cr * Gzz_real   # G_imag


def green_layer_simple(x, freq):
    """x: (2, B, N, 3) float32 -> (B, N, 2) float32 (real, imag of the Gzz term)."""
    omega = 2.0 * PAI * freq
    k = omega * (MU0 * EPSILON0) ** 0.5

    two, B, N, three = x.shape
    assert two == 2 and three == 3
    M = B * N

    # One fused layout pass: (tloc - rloc) + component transpose -> (3, M) planes.
    d = (x[0] - x[1]).reshape(M, 3)
    planes = jnp.transpose(d, (1, 0))            # (3, M): dx, dy, dz planes

    # Tile selection: aim for >= _MIN_TILES grid steps (megacore sharding on v7x
    # and DMA/compute overlap), cap the tile at _MAX_TILE_ROWS x 128, and when
    # capped pick a near-equal divisor so row padding stays small.
    rows_needed = -(-M // _LANES)
    n_tiles = max(_MIN_TILES, -(-rows_needed // _MAX_TILE_ROWS))
    tile_rows = -(-rows_needed // n_tiles)
    tile_rows = max(_SUBLANES, -(-tile_rows // _SUBLANES) * _SUBLANES)
    rows = -(-rows_needed // tile_rows) * tile_rows
    Mp = rows * _LANES

    if Mp != M:
        # Pad dx with 1.0 (dy, dz with 0.0) so padded lanes keep r2 > 0 and the
        # sliced-away tail stays finite (no NaN/Inf from rsqrt(0)).
        pad = jnp.zeros((3, Mp - M), dtype=planes.dtype).at[0].set(1.0)
        planes = jnp.concatenate([planes, pad], axis=1)
    planes = planes.reshape(3, rows, _LANES)

    kernel = functools.partial(_green_kernel, k=k, omega=omega)

    out = pl.pallas_call(
        kernel,
        grid=(rows // tile_rows,),
        in_specs=[pl.BlockSpec((3, tile_rows, _LANES), lambda i: (0, i, 0))],
        out_specs=pl.BlockSpec((2, tile_rows, _LANES), lambda i: (0, i, 0)),
        out_shape=jax.ShapeDtypeStruct((2, rows, _LANES), jnp.float32),
        compiler_params=pltpu.CompilerParams(
            dimension_semantics=("parallel",)),
    )(planes)

    # Un-pad and do the (B, N, 2) interleave once, outside the hot path.
    out = out.reshape(2, Mp)[:, :M].reshape(2, B, N)
    return jnp.moveaxis(out, 0, -1)


def _reference(x, freq):
    """Pure-JAX transcription of the PyTorch forward (for correctness check)."""
    omega = 2.0 * PAI * freq
    k = omega * (MU0 * EPSILON0) ** 0.5
    tloc, rloc = x[0], x[1]
    d = tloc - rloc
    r = jnp.sqrt(d[..., 0] ** 2 + d[..., 1] ** 2 + d[..., 2] ** 2)
    g_real = jnp.cos(-k * r) / (4 * PAI * r)
    g_imag = jnp.sin(-k * r) / (4 * PAI * r)
    coeff_imag = -omega * MU0
    h1_real = r ** 2 - 1 / k ** 2
    h1_imag = -r / k
    h2_real = -1 + 3 / (k ** 2 * r ** 2)
    h2_imag = 3 / (k * r)
    Gzz_real = h1_real + d[..., 2] ** 2 * h2_real
    Gzz_imag = h1_imag + d[..., 2] ** 2 * h2_imag
    G_imag = (g_real / r ** 2 * Gzz_real - g_imag / r ** 2 * Gzz_imag) * coeff_imag
    G_real = (g_real / r ** 2 * Gzz_imag + g_imag / r ** 2 * Gzz_real) * -coeff_imag
    return jnp.stack([G_real, G_imag], axis=-1)


if __name__ == "__main__":
    B, N = 2, 16
    freq = 3.0e8  # 300 MHz

    key = jax.random.PRNGKey(0)
    x = jax.random.normal(key, (2, B, N, 3), dtype=jnp.float32)

    out = green_layer_simple(x, freq)
    out = jax.block_until_ready(out)

    ref = _reference(x, freq)
    assert out.shape == (B, N, 2)
    assert jnp.all(jnp.isfinite(out))
    assert jnp.allclose(out, ref, rtol=1e-4, atol=1e-5)

    print("KERNEL_OK")
</pallas_src>

<mosaic_0001>
module attributes {stable_mosaic.version = 11 : i64} {
  func.func @_green_kernel(%arg0: i32, %arg1: memref<3x8x128xf32, #tpu.memory_space<vmem>>, %arg2: memref<2x8x128xf32, #tpu.memory_space<vmem>>) attributes {dimension_semantics = [#tpu.dimension_semantics<parallel>], iteration_bounds = array<i64: 1>, scalar_prefetch = 0 : i64, scratch_operands = 0 : i64, tpu.core_type = #tpu.core_type<tc>, window_params = [{transform_indices = @transform_0, window_bounds = array<i64: 3, 8, 128>}, {transform_indices = @transform_1, window_bounds = array<i64: 2, 8, 128>}]} {
    %c0 = arith.constant 0 : index
    %c0_0 = arith.constant 0 : index
    %c0_1 = arith.constant 0 : index
    %0 = vector.load %arg1[%c0, %c0_0, %c0_1] : memref<3x8x128xf32, #tpu.memory_space<vmem>>, vector<1x8x128xf32>
    %1 = vector.shape_cast %0 : vector<1x8x128xf32> to vector<8x128xf32>
    %c1 = arith.constant 1 : index
    %c0_2 = arith.constant 0 : index
    %c0_3 = arith.constant 0 : index
    %2 = vector.load %arg1[%c1, %c0_2, %c0_3] : memref<3x8x128xf32, #tpu.memory_space<vmem>>, vector<1x8x128xf32>
    %3 = vector.shape_cast %2 : vector<1x8x128xf32> to vector<8x128xf32>
    %c2 = arith.constant 2 : index
    %c0_4 = arith.constant 0 : index
    %c0_5 = arith.constant 0 : index
    %4 = vector.load %arg1[%c2, %c0_4, %c0_5] : memref<3x8x128xf32, #tpu.memory_space<vmem>>, vector<1x8x128xf32>
    %5 = vector.shape_cast %4 : vector<1x8x128xf32> to vector<8x128xf32>
    %6 = arith.mulf %5, %5 : vector<8x128xf32>
    %7 = arith.mulf %1, %1 : vector<8x128xf32>
    %8 = arith.mulf %3, %3 : vector<8x128xf32>
    %9 = arith.addf %7, %8 : vector<8x128xf32>
    %10 = arith.addf %9, %6 : vector<8x128xf32>
    %11 = math.rsqrt %10 : vector<8x128xf32>
    %12 = arith.mulf %10, %11 : vector<8x128xf32>
    %13 = arith.mulf %11, %11 : vector<8x128xf32>
    %cst = arith.constant -6.28753519 : f32
    %14 = vector.broadcast %cst : f32 to vector<8x128xf32>
    %15 = arith.mulf %14, %12 : vector<8x128xf32>
    %cst_6 = arith.constant 188.49556 : f32
    %16 = vector.broadcast %cst_6 : f32 to vector<8x128xf32>
    %17 = arith.mulf %16, %13 : vector<8x128xf32>
    %18 = arith.mulf %17, %11 : vector<8x128xf32>
    %19 = math.cos %15 : vector<8x128xf32>
    %20 = arith.mulf %19, %18 : vector<8x128xf32>
    %21 = math.sin %15 : vector<8x128xf32>
    %22 = arith.mulf %21, %18 : vector<8x128xf32>
    %cst_7 = arith.constant 0.0252952613 : f32
    %23 = vector.broadcast %cst_7 : f32 to vector<8x128xf32>
    %24 = arith.subf %10, %23 : vector<8x128xf32>
    %cst_8 = arith.constant -0.159044832 : f32
    %25 = vector.broadcast %cst_8 : f32 to vector<8x128xf32>
    %26 = arith.mulf %25, %12 : vector<8x128xf32>
    %cst_9 = arith.constant 0.0758857802 : f32
    %27 = vector.broadcast %cst_9 : f32 to vector<8x128xf32>
    %28 = arith.mulf %27, %13 : vector<8x128xf32>
    %cst_10 = arith.constant 1.000000e+00 : f32
    %29 = vector.broadcast %cst_10 : f32 to vector<8x128xf32>
    %30 = arith.subf %28, %29 : vector<8x128xf32>
    %cst_11 = arith.constant 0.477134526 : f32
    %31 = vector.broadcast %cst_11 : f32 to vector<8x128xf32>
    %32 = arith.mulf %31, %11 : vector<8x128xf32>
    %33 = arith.mulf %6, %30 : vector<8x128xf32>
    %34 = arith.addf %24, %33 : vector<8x128xf32>
    %35 = arith.mulf %6, %32 : vector<8x128xf32>
    %36 = arith.addf %26, %35 : vector<8x128xf32>
    %37 = arith.mulf %20, %36 : vector<8x128xf32>
    %38 = arith.mulf %22, %34 : vector<8x128xf32>
    %39 = arith.addf %37, %38 : vector<8x128xf32>
    %c0_12 = arith.constant 0 : index
    %c0_13 = arith.constant 0 : index
    %c0_14 = arith.constant 0 : index
    %40 = vector.load %arg2[%c0_12, %c0_13, %c0_14] : memref<2x8x128xf32, #tpu.memory_space<vmem>>, vector<1x8x128xf32>
    %41 = vector.shape_cast %40 : vector<1x8x128xf32> to vector<8x128xf32>
    %42 = vector.shape_cast %39 : vector<8x128xf32> to vector<1x8x128xf32>
    tpu.vector_store %arg2[%c0_12, %c0_13, %c0_14], %42 {strides = array<i32>} : memref<2x8x128xf32, #tpu.memory_space<vmem>>, vector<1x8x128xf32>,
    %43 = arith.mulf %22, %36 : vector<8x128xf32>
    %44 = arith.mulf %20, %34 : vector<8x128xf32>
    %45 = arith.subf %43, %44 : vector<8x128xf32>
    %c1_15 = arith.constant 1 : index
    %c0_16 = arith.constant 0 : index
    %c0_17 = arith.constant 0 : index
    %46 = vector.load %arg2[%c1_15, %c0_16, %c0_17] : memref<2x8x128xf32, #tpu.memory_space<vmem>>, vector<1x8x128xf32>
    %47 = vector.shape_cast %46 : vector<1x8x128xf32> to vector<8x128xf32>
    %48 = vector.shape_cast %45 : vector<8x128xf32> to vector<1x8x128xf32>
    tpu.vector_store %arg2[%c1_15, %c0_16, %c0_17], %48 {strides = array<i32>} : memref<2x8x128xf32, #tpu.memory_space<vmem>>, vector<1x8x128xf32>,
    return
  }
  func.func @transform_0(%arg0: i32) -> (i32, i32, i32) {
    %c0_i32 = arith.constant 0 : i32
    %c0_i32_0 = arith.constant 0 : i32
    %c0_i32_1 = arith.constant 0 : i32
    return %c0_i32, %arg0, %c0_i32_0 : i32, i32, i32
  }
  func.func @transform_1(%arg0: i32) -> (i32, i32, i32) {
    %c0_i32 = arith.constant 0 : i32
    %c0_i32_0 = arith.constant 0 : i32
    %c0_i32_1 = arith.constant 0 : i32
    return %c0_i32, %arg0, %c0_i32_0 : i32, i32, i32
  }
}

</mosaic_0001>

<llo_original>
// kernel: tpu_custom_call.1
$region0: #{tpu_custom_call.1}
  #allocation0 [shape = 'u32[]', space=smem, size = 0x4, offset = 0x4, fixed_abs, tag = 'smem constant byte address 0x4 - core index']
  #allocation1 [shape = 'u32[144,128]{1,0:T(1,128)}', space=vmem, size = 0x12000, scoped, tag = 'internal scratch']
  %s0 = inlined_call_operand.hbm [shape: f32[3,8,128], index: 0, kind: input, shape index: {}]
  %s1 = inlined_call_operand.hbm [shape: f32[2,8,128], index: 1, kind: output, shape index: {}]
  %s2 = sld [smem:[#allocation0]]
  $region18: #{tpu_custom_call.1} parent=0
    _
  %s4 = ssub.s32 1, %s2
  %s5 = scalar_select 0, %s4, %s2
  $region1: #{tpu_custom_call.1} parent=0
    #allocation2 [shape = 'u8[12288]{0}', space=vmem, size = 0x3000, scoped, tag = 'input window, operand 0, single buffered']
    #allocation3 [shape = 's32[1]{0}', space=sflag, size = 0x4, scoped, tag = 'scoped memory for tpu_custom_call.1']
    #allocation4 [shape = 's32[1]{0}', space=sflag, size = 0x4, scoped, tag = 'scoped memory for tpu_custom_call.1']
    #allocation5 [shape = 'u8[8192]{0}', space=vmem, size = 0x2000, scoped, tag = 'output window, operand 0, single buffered']
    %6 = vsyncpa [#allocation3], 0
    %7 = vsyncpa [#allocation4], 0
    // Predicated region
    $region2: #{tpu_custom_call.1} parent=1 // pred_check
      _
    $region3: #{tpu_custom_call.1} parent=1 // pred_check_branch
      %9 = sbr.rel (0) target = $region5
    $region4: #{tpu_custom_call.1} parent=1 // pred_region
      %s11 = ssub.s32 384, 384
      %12 = vsyncadd [#allocation3], %s11
      %s13 = sshll.u32 [#allocation2], 4
      %s14 = int_to_ptr.vmem [resolvable:$true] %s13
      %19 = dma.hbm_to_vmem [thread:$0]  %s0, 384, %s14, [#allocation3], 128, 128, 8
    $region5: #{tpu_custom_call.1} parent=1 // pred_fallthru
      _
    // Predicated region
    $region6: #{tpu_custom_call.1} parent=1 // pred_check
      _
    $region7: #{tpu_custom_call.1} parent=1 // pred_check_branch
      %21 = sbr.rel (0) target = $region9
    $region8: #{tpu_custom_call.1} parent=1 // pred_region
      %22 = dma.done [#allocation3], 384
    $region9: #{tpu_custom_call.1} parent=1 // pred_fallthru
      _
    %v23 = vld [vmem:[#allocation2] sm:$0xff]
    %s24 = scalar_lea.vmem [#allocation2], 8
    %v25 = vld [vmem:[%s24] sm:$0xff]
    %s26 = scalar_lea.vmem [#allocation2], 16
    %v27 = vld [vmem:[%s26] sm:$0xff]
    %v28 = vmul.f32 %v27, %v27
    %v29 = vmul.f32 %v23, %v23
    %v30 = vmul.f32 %v25, %v25
    %v31 = vadd.f32 %v29, %v30
    %v32 = vadd.f32 %v31, %v28
    %v33 = vrsqrt.pop %v32
    %v34 = vmul.f32 %v32, %v33
    %v35 = vmul.f32 %v33, %v33
    %v36 = vmul.f32 %v34, -6.287535
    %v37 = vmul.f32 %v35, 188.49556
    %v38 = vmul.f32 %v37, %v33
    %v39 = vand.u32 2147483647, %v36
    %vm40 = vcmp.le.f32.partialorder %v39, 0.7853982
    %vm41 = vcmp.lt.s32.totalorder %v36, 0
    %v42 = vand.u32 %v36, 2139095040
    %v43 = vshrl.u32 %v42, 23
    %v44 = vsub.s32 %v43, 127
    %v45 = vand.u32 2147483647, %v36
    %v46 = vand.u32 %v45, 8388607
    %v47 = vor.u32 %v46, 8388608
    %v48 = vsub.s32 0, %v47
    %v49 = vadd.s32 %v44, 1
    %vm50 = vcmp.gt.s32.totalorder %v49, 0
    %v51 = vsel %vm50, %v49, 0
    %v52 = vshrl.u32 %v51, 5
    %v53 = vand.u32 %v51, 31
    %v54 = vsub.s32 32, %v53
    %v55 = vshrl.u32 683565275, %v54
    %v56 = vshll.u32 683565275, %v53
    %v57 = vshrl.u32 2475754826, %v54
    %v58 = vor.u32 %v56, %v57
    %v59 = vshll.u32 2475754826, %v53
    %v60 = vshrl.u32 2131351028, %v54
    %v61 = vor.u32 %v59, %v60
    %v62 = vshll.u32 2131351028, %v53
    %v63 = vshrl.u32 2102212464, %v54
    %v64 = vor.u32 %v62, %v63
    %v65 = vshll.u32 2102212464, %v53
    %v66 = vshrl.u32 920167782, %v54
    %v67 = vor.u32 %v65, %v66
    %v68 = vshll.u32 920167782, %v53
    %v69 = vshrl.u32 1326507024, %v54
    %v70 = vor.u32 %v68, %v69
    %vm71 = vcmp.lt.s32.totalorder %v52, 1
    %vm72 = vcmp.lt.s32.totalorder %v52, 2
    %vm73 = vcmp.lt.s32.totalorder %v52, 3
    %vm74 = vcmp.lt.s32.totalorder %v52, 4
    %v75 = vsel %vm71, %v55, %v58
    %v76 = vsel %vm74, %v64, 2102212464
    %v77 = vsel %vm73, %v61, %v76
    %v78 = vsel %vm72, %v75, %v77
    %v79 = vsel %vm71, %v58, %v61
    %v80 = vsel %vm74, %v67, 920167782
    %v81 = vsel %vm73, %v64, %v80
    %v82 = vsel %vm72, %v79, %v81
    %v83 = vsel %vm71, %v61, %v64
    %v84 = vsel %vm74, %v70, 1326507024
    %v85 = vsel %vm73, %v67, %v84
    %v86 = vsel %vm72, %v83, %v85
    %v87 = vshll.u32 %v47, 8
    %v88 = vmul.u32.u64.compose %v87, %v86
    %v89 = vextract.low.u32 %v88
    %v90 = vextract.high.u32 %v88
    %v91 = vmul.u32.u64.compose %v87, %v82
    %v92 = vextract.low.u32 %v91
    %v93 = vextract.high.u32 %v91
    %v94 = vmul.u32 %v87, %v78
    %v95 = vadd.s32 %v90, %v92
    %vm96 = vc.u32 %v90, %v92
    %v97 = vadd.s32 %v93, 1
    %v98 = vsel %vm96, %v97, %v93
    %v99 = vadd.s32 %v94, %v98
    %v100 = vadd.s32 %v99, 536870912
    %v101 = vshrl.u32 %v100, 30
    %v102 = vshll.u32 %v101, 30
    %v103 = vsub.s32 %v99, %v102
    %vm104 = vcmp.lt.s32.totalorder %v103, 0
    %v105 = vsub.s32 0, %v103
    %v106 = vsel %vm104, %v105, %v103
    %v107 = vclz %v106
    %v108 = vsub.s32 %v107, 2
    %vm109 = vcmp.gt.s32.totalorder 0, %v108
    %v110 = vsel %vm109, 0, %v108
    %v111 = vsub.s32 32, %v110
    %v112 = vshll.u32 %v103, %v110
    %v113 = vshrl.u32 %v95, %v111
    %v114 = vor.u32 %v112, %v113
    %v115 = vsub.s32 4294967266, %v110
    %v116 = vadd.s32 %v115, 127
    %v117 = vshll.u32 %v116, 23
    %v118 = vor.u32 4788187, %v117
    %v119 = vand.u32 2147483647, %v118
    %v121 = vcvt.s32.f32 %v114
    %v122 = vmul.f32 %v121, %v119
    %v123 = vxor.u32 %v122, 2147483648
    %v124 = vsel %vm41, %v123, %v122
    %v125 = vsub.s32 4, %v101
    %v126 = vsel %vm41, %v125, %v101
    %v127 = vsel %vm40, %v36, %v124
    %v128 = vsel %vm40, 0, %v126
    %v129 = vcosq.f32.pop %v127
    %v130 = vsinq.f32.pop %v127
    %vm131 = vweird.f32 %v36
    %v132 = vand.u32 %v128, 3
    %vm133 = vcmp.lt.s32.totalorder %v132, 2
    %vm134 = vcmp.eq.s32.totalorder %v132, 0
    %v135 = vxor.u32 %v130, 2147483648
    %v136 = vsel %vm134, %v129, %v135
    %vm137 = vcmp.eq.s32.totalorder %v132, 2
    %v138 = vxor.u32 %v129, 2147483648
    %v139 = vsel %vm137, %v138, %v130
    %v140 = vsel %vm133, %v136, %v139
    %v141 = vsel %vm131, nan, %v140
    %v142 = vmul.f32 %v141, %v38
    %v143 = vand.u32 2147483647, %v36
    %vm144 = vcmp.le.f32.partialorder %v143, 0.7853982
    %vm145 = vcmp.lt.s32.totalorder %v36, 0
    %v146 = vand.u32 %v36, 2139095040
    %v147 = vshrl.u32 %v146, 23
    %v148 = vsub.s32 %v147, 127
    %v149 = vand.u32 2147483647, %v36
    %v150 = vand.u32 %v149, 8388607
    %v151 = vor.u32 %v150, 8388608
    %v152 = vsub.s32 0, %v151
    %v153 = vadd.s32 %v148, 1
    %vm154 = vcmp.gt.s32.totalorder %v153, 0
    %v155 = vsel %vm154, %v153, 0
    %v156 = vshrl.u32 %v155, 5
    %v157 = vand.u32 %v155, 31
    %v158 = vsub.s32 32, %v157
    %v159 = vshrl.u32 683565275, %v158
    %v160 = vshll.u32 683565275, %v157
    %v161 = vshrl.u32 2475754826, %v158
    %v162 = vor.u32 %v160, %v161
    %v163 = vshll.u32 2475754826, %v157
    %v164 = vshrl.u32 2131351028, %v158
    %v165 = vor.u32 %v163, %v164
    %v166 = vshll.u32 2131351028, %v157
    %v167 = vshrl.u32 2102212464, %v158
    %v168 = vor.u32 %v166, %v167
    %v169 = vshll.u32 2102212464, %v157
    %v170 = vshrl.u32 920167782, %v158
    %v171 = vor.u32 %v169, %v170
    %v172 = vshll.u32 920167782, %v157
    %v173 = vshrl.u32 1326507024, %v158
    %v174 = vor.u32 %v172, %v173
    %vm175 = vcmp.lt.s32.totalorder %v156, 1
    %vm176 = vcmp.lt.s32.totalorder %v156, 2
    %vm177 = vcmp.lt.s32.totalorder %v156, 3
    %vm178 = vcmp.lt.s32.totalorder %v156, 4
    %v179 = vsel %vm175, %v159, %v162
    %v180 = vsel %vm178, %v168, 2102212464
    %v181 = vsel %vm177, %v165, %v180
    %v182 = vsel %vm176, %v179, %v181
    %v183 = vsel %vm175, %v162, %v165
    %v184 = vsel %vm178, %v171, 920167782
    %v185 = vsel %vm177, %v168, %v184
    %v186 = vsel %vm176, %v183, %v185
    %v187 = vsel %vm175, %v165, %v168
    %v188 = vsel %vm178, %v174, 1326507024
    %v189 = vsel %vm177, %v171, %v188
    %v190 = vsel %vm176, %v187, %v189
    %v191 = vshll.u32 %v151, 8
    %v192 = vmul.u32.u64.compose %v191, %v190
    %v193 = vextract.low.u32 %v192
    %v194 = vextract.high.u32 %v192
    %v195 = vmul.u32.u64.compose %v191, %v186
    %v196 = vextract.low.u32 %v195
    %v197 = vextract.high.u32 %v195
    %v198 = vmul.u32 %v191, %v182
    %v199 = vadd.s32 %v194, %v196
    %vm200 = vc.u32 %v194, %v196
    %v201 = vadd.s32 %v197, 1
    %v202 = vsel %vm200, %v201, %v197
    %v203 = vadd.s32 %v198, %v202
    %v204 = vadd.s32 %v203, 536870912
    %v205 = vshrl.u32 %v204, 30
    %v206 = vshll.u32 %v205, 30
    %v207 = vsub.s32 %v203, %v206
    %vm208 = vcmp.lt.s32.totalorder %v207, 0
    %v209 = vsub.s32 0, %v207
    %v210 = vsel %vm208, %v209, %v207
    %v211 = vclz %v210
    %v212 = vsub.s32 %v211, 2
    %vm213 = vcmp.gt.s32.totalorder 0, %v212
    %v214 = vsel %vm213, 0, %v212
    %v215 = vsub.s32 32, %v214
    %v216 = vshll.u32 %v207, %v214
    %v217 = vshrl.u32 %v199, %v215
    %v218 = vor.u32 %v216, %v217
    %v219 = vsub.s32 4294967266, %v214
    %v220 = vadd.s32 %v219, 127
    %v221 = vshll.u32 %v220, 23
    %v222 = vor.u32 4788187, %v221
    %v223 = vand.u32 2147483647, %v222
    %v225 = vcvt.s32.f32 %v218
    %v226 = vmul.f32 %v225, %v223
    %v227 = vxor.u32 %v226, 2147483648
    %v228 = vsel %vm145, %v227, %v226
    %v229 = vsub.s32 4, %v205
    %v230 = vsel %vm145, %v229, %v205
    %v231 = vsel %vm144, %v36, %v228
    %v232 = vsel %vm144, 0, %v230
    %v233 = vcosq.f32.pop %v231
    %v234 = vsinq.f32.pop %v231
    %vm235 = vweird.f32 %v36
    %v236 = vadd.s32 %v232, 3
    %v237 = vand.u32 %v236, 3
    %vm238 = vcmp.lt.s32.totalorder %v237, 2
    %vm239 = vcmp.eq.s32.totalorder %v237, 0
    %v240 = vxor.u32 %v234, 2147483648
    %v241 = vsel %vm239, %v233, %v240
    %vm242 = vcmp.eq.s32.totalorder %v237, 2
    %v243 = vxor.u32 %v233, 2147483648
    %v244 = vsel %vm242, %v243, %v234
    %v245 = vsel %vm238, %v241, %v244
    %v246 = vsel %vm235, nan, %v245
    %v247 = vmul.f32 %v246, %v38
    %v248 = vsub.f32 %v32, 0.025295261
    %v249 = vmul.f32 %v34, -0.15904483
    %v250 = vmul.f32 %v35, 0.07588578
    %v251 = vsub.f32 %v250, 1.0
    %v252 = vmul.f32 %v33, 0.47713453
    %v253 = vmul.f32 %v28, %v251
    %v254 = vadd.f32 %v248, %v253
    %v255 = vmul.f32 %v28, %v252
    %v256 = vadd.f32 %v249, %v255
    %v257 = vmul.f32 %v142, %v256
    %v258 = vmul.f32 %v247, %v254
    %v259 = vadd.f32 %v257, %v258
    %260 = vst [vmem:[#allocation5] sm:$0xff] %v259
    %v261 = vmul.f32 %v247, %v256
    %v262 = vmul.f32 %v142, %v254
    %v263 = vsub.f32 %v261, %v262
    %s264 = scalar_lea.vmem [#allocation5], 8
    %265 = vst [vmem:[%s264] sm:$0xff] %v263
    // Predicated region
    $region10: #{tpu_custom_call.1} parent=1 // pred_check
      _
    $region11: #{tpu_custom_call.1} parent=1 // pred_check_branch
      %267 = sbr.rel (0) target = $region13
    $region12: #{tpu_custom_call.1} parent=1 // pred_region
      %s269 = ssub.s32 256, 256
      %270 = vsyncadd [#allocation4], %s269
      %s271 = sshll.u32 [#allocation5], 4
      %s272 = int_to_ptr.vmem [resolvable:$true] %s271
      %277 = dma.vmem_to_hbm [thread:$0]  %s272, 256, %s1, [#allocation4], 128, 128, 8
    $region13: #{tpu_custom_call.1} parent=1 // pred_fallthru
      _
    // Predicated region
    $region14: #{tpu_custom_call.1} parent=1 // pred_check
      _
    $region15: #{tpu_custom_call.1} parent=1 // pred_check_branch
      %279 = sbr.rel (0) target = $region17
    $region16: #{tpu_custom_call.1} parent=1 // pred_region
      %280 = dma.done [#allocation4], 256
    $region17: #{tpu_custom_call.1} parent=1 // pred_fallthru
      _
    %281 = vsyncpa [#allocation3], 1
    %282 = vsyncpa [#allocation4], 1

</llo_original>
